<compile_context>
chip_gen: v7x
topology: tpu7x:2x2x1
jax: 0.10.0
libtpu: 0.0.40
codegen_flags: <defaults>
</compile_context>

<pallas_src>
import functools
import math

import jax
import jax.numpy as jnp
from jax.experimental import pallas as pl
from jax.experimental.pallas import tpu as pltpu

NUM_CLASSES = 60
N_PAD = 128          # class dim padded to a full lane width
NEG_INF = -1e30      # finite large-negative used only post-scaling in the epilogue


def _disc_loss2_kernel(x_ref, w_ref, b_ref, s_ref, lab_ref, out_ref, acc_ref,
                       *, tau, tk, batch, w_resident):
    """One (B-tile, K-tile) grid step.

    x_ref:   (TB, TK)        native dtype  flattened inputs (K-streamed)
    w_ref:   (Dp, 128)|(TK,128) native     teacher weight (resident or K-streamed)
    b_ref:   (1, 128)        f32           teacher bias (zero-padded lanes)
    s_ref:   (TB, 128)       f32           student logits (zero-padded lanes/rows)
    lab_ref: (TB, 1)         i32           class labels (padded rows = 0)
    out_ref: (1, 1, 128)     f32           per-B-tile partials: lane0=CE sum, lane1=KL sum
    acc_ref: (TB, 128)       f32 scratch   teacher logit accumulator (resident across K)
    """
    b_idx = pl.program_id(0)
    k = pl.program_id(1)

    @pl.when(k == 0)
    def _init():
        acc_ref[...] = jnp.zeros_like(acc_ref)

    # Streaming teacher matmul: native-dtype (bf16) tiles on the MXU, f32 accumulation.
    if w_resident:
        start = pl.multiple_of(k * tk, 128)
        w_blk = w_ref[pl.ds(start, tk), :]
    else:
        w_blk = w_ref[...]
    acc_ref[...] += jnp.dot(x_ref[...], w_blk, preferred_element_type=jnp.float32)

    @pl.when(k == pl.num_programs(1) - 1)
    def _finalize():
        tb = acc_ref.shape[0]

        lane = jax.lax.broadcasted_iota(jnp.int32, (tb, N_PAD), 1)
        lane_valid = lane < NUM_CLASSES                               # (TB,128) bool
        row = jax.lax.broadcasted_iota(jnp.int32, (tb, 1), 0) + b_idx * tb
        row_valid = (row < batch).astype(jnp.float32)                 # (TB,1)

        teacher = acc_ref[...] + b_ref[...]          # padded lanes exactly 0 + 0
        s = s_ref[...]                               # padded lanes exactly 0
        lab = lab_ref[...]                           # (TB,1) int32
        one_hot = (lane == lab).astype(jnp.float32)  # padded lanes 0 (labels < 60)

        # ---- base CE, summed over this B-tile (mean taken in the wrapper).
        s_m = jnp.where(lane_valid, s, NEG_INF)
        m_s = jnp.max(s_m, axis=1, keepdims=True)
        lse_s = m_s + jnp.log(jnp.sum(jnp.exp(s_m - m_s), axis=1, keepdims=True))
        picked = jnp.sum(one_hot * s, axis=1, keepdims=True)
        base_sum = jnp.sum(row_valid * (lse_s - picked), keepdims=True)      # (1,1)

        # ---- soft KD: kl_div(log_p, log_q, log_target=True), summed.
        inv_t = 1.0 / tau
        # log_softmax(one_hot/T): rows of one_hot/T only contain {0, 1/T} over the
        # 60 real classes, so the LSE is a compile-time constant.
        lse_p = math.log((NUM_CLASSES - 1) + math.exp(inv_t))
        log_p = one_hot * inv_t - lse_p                                      # (TB,128)

        tt = jnp.where(lane_valid, teacher * inv_t, NEG_INF)   # mask AFTER scaling
        m_t = jnp.max(tt, axis=1, keepdims=True)
        log_q = tt - (m_t + jnp.log(jnp.sum(jnp.exp(tt - m_t), axis=1,
                                            keepdims=True)))
        kl_lane = jnp.where(lane_valid, jnp.exp(log_q) * (log_q - log_p), 0.0)
        kl_sum = jnp.sum(row_valid * jnp.sum(kl_lane, axis=1, keepdims=True),
                         keepdims=True)                                      # (1,1)

        out_lane = jax.lax.broadcasted_iota(jnp.int32, (1, 1, N_PAD), 2)
        out_ref[...] = jnp.where(out_lane == 0, base_sum,
                                 jnp.where(out_lane == 1, kl_sum, 0.0))


def _round_up(x, m):
    return (x + m - 1) // m * m


def _vmem_budget_bytes():
    """Per-generation VMEM budget for the streamed/resident operands."""
    try:
        vmem = int(pltpu.get_tpu_info().vmem_capacity_bytes)
    except Exception:
        vmem = 64 * 1024 * 1024          # v7x (smallest physical VMEM) as safe default
    return min(24 * 1024 * 1024, vmem // 3)


def _pick_batch_tile(b_rows):
    """Largest sublane-aligned batch tile dividing the padded batch; prefer >=2 tiles
    (keeps the 'parallel' B axis shardable across v7x's two TensorCores)."""
    cands = (512, 256, 128, 64, 32, 16, 8)
    for tb in cands:
        if b_rows % tb == 0 and b_rows // tb >= 2:
            return tb
    for tb in cands:
        if b_rows % tb == 0:
            return tb
    return b_rows


def _plan_tiles(b_rows, d_pad, x_itemsize, w_itemsize):
    """Pick (TB, TK, w_resident, footprint) against the per-chip VMEM budget."""
    tb = _pick_batch_tile(b_rows)
    budget = _vmem_budget_bytes()

    # Fixed-resident buffers: acc scratch + double-buffered s, labels, bias, out.
    fixed = (tb * N_PAD * 4                # acc scratch
             + 2 * tb * N_PAD * 4          # student logits (2 buffers)
             + 2 * tb * N_PAD * 4          # labels, lane-padded layout (2 buffers)
             + 4 * N_PAD * 4               # bias + output (2 buffers each)
             )

    w_bytes = d_pad * N_PAD * w_itemsize
    w_resident = (2 * w_bytes) <= budget // 2     # 2x: conservative double-buffer count

    remaining = budget - fixed - (2 * w_bytes if w_resident else 0)
    per_tk = 2 * tb * x_itemsize + (0 if w_resident else 2 * N_PAD * w_itemsize)
    max_tk = max(128, (max(remaining, 0) // per_tk) // 128 * 128)
    tk = min(d_pad, max_tk)
    while d_pad % tk != 0:
        tk -= 128

    footprint = (fixed + 2 * tb * tk * x_itemsize
                 + (2 * w_bytes if w_resident else 2 * tk * N_PAD * w_itemsize))
    return tb, tk, w_resident, footprint


def prepare_teacher_params(teacher_w, teacher_b):
    """Setup-time padding of the teacher parameters (hoisted out of the hot path)."""
    d, n = teacher_w.shape
    assert n == NUM_CLASSES
    d_pad = _round_up(d, 128)
    w_pad = jnp.pad(teacher_w, ((0, d_pad - d), (0, N_PAD - n)))            # zero pad
    b_pad = jnp.pad(teacher_b.astype(jnp.float32).reshape(1, n),
                    ((0, 0), (0, N_PAD - n)))                               # zero pad
    return w_pad, b_pad


def discrimination_loss2(inputs, outputs, labels, w_pad, b_pad, *, alpha, tau):
    """JAX wrapper: lane/batch padding, resident-or-streamed weight, partial combine."""
    batch = inputs.shape[0]
    x = inputs.reshape(batch, -1)              # keep HBM dtype (bf16 stays bf16)
    d = x.shape[1]
    d_pad = w_pad.shape[0]
    assert w_pad.shape == (d_pad, N_PAD) and d_pad >= d and d_pad % 128 == 0
    assert outputs.shape == (batch, NUM_CLASSES)

    # Pad batch to a multiple of 8 (masked in the epilogue) and D to a multiple of 128.
    b_rows = _round_up(batch, 8)
    x = jnp.pad(x, ((0, b_rows - batch), (0, d_pad - d)))
    s_pad = jnp.pad(outputs.astype(jnp.float32),
                    ((0, b_rows - batch), (0, N_PAD - NUM_CLASSES)))
    lab = jnp.pad(labels.astype(jnp.int32), (0, b_rows - batch)).reshape(b_rows, 1)

    tb, tk, w_resident, footprint = _plan_tiles(b_rows, d_pad, x.dtype.itemsize,
                                                w_pad.dtype.itemsize)
    nb, nk = b_rows // tb, d_pad // tk

    kernel = functools.partial(_disc_loss2_kernel, tau=float(tau), tk=tk,
                               batch=batch, w_resident=w_resident)

    if w_resident:
        w_spec = pl.BlockSpec((d_pad, N_PAD), lambda b, k: (0, 0))   # fetched once
    else:
        w_spec = pl.BlockSpec((tk, N_PAD), lambda b, k: (k, 0))      # K-streamed

    grid_spec = pltpu.PrefetchScalarGridSpec(
        num_scalar_prefetch=0,
        grid=(nb, nk),
        in_specs=[
            pl.BlockSpec((tb, tk), lambda b, k: (b, k)),             # x: K-streamed
            w_spec,                                                  # teacher weight
            pl.BlockSpec((1, N_PAD), lambda b, k: (0, 0)),           # bias: resident
            pl.BlockSpec((tb, N_PAD), lambda b, k: (b, 0)),          # student logits
            pl.BlockSpec((tb, 1), lambda b, k: (b, 0)),              # labels
        ],
        out_specs=pl.BlockSpec((1, 1, N_PAD), lambda b, k: (b, 0, 0)),
        scratch_shapes=[pltpu.VMEM((tb, N_PAD), jnp.float32)],
    )

    w_bytes = d_pad * N_PAD * w_pad.dtype.itemsize
    bytes_accessed = (b_rows * d_pad * x.dtype.itemsize
                      + w_bytes * (1 if w_resident else nb)
                      + b_rows * N_PAD * 4 + b_rows * 4 + N_PAD * 4
                      + nb * N_PAD * 4)
    cost = pl.CostEstimate(flops=2 * b_rows * d_pad * N_PAD,
                           transcendentals=5 * b_rows * N_PAD,
                           bytes_accessed=bytes_accessed)

    vmem_limit = int(min(48 * 1024 * 1024,
                         max(32 * 1024 * 1024, footprint + 8 * 1024 * 1024)))

    partials = pl.pallas_call(
        kernel,
        out_shape=jax.ShapeDtypeStruct((nb, 1, N_PAD), jnp.float32),
        grid_spec=grid_spec,
        compiler_params=pltpu.CompilerParams(
            dimension_semantics=("parallel", "arbitrary"),
            vmem_limit_bytes=vmem_limit),
        cost_estimate=cost,
    )(x, w_pad, b_pad, s_pad, lab)

    base_loss = jnp.sum(partials[:, 0, 0]) / batch
    distill_loss = jnp.sum(partials[:, 0, 1]) * (tau * tau) / (batch * NUM_CLASSES)
    return base_loss + alpha * distill_loss


def _reference(inputs, outputs, labels, teacher_w, teacher_b, *, alpha, tau):
    """Pure-JAX reference mirroring the PyTorch forward ('soft' path)."""
    batch = inputs.shape[0]
    x = inputs.reshape(batch, -1)
    s = outputs.astype(jnp.float32)
    one_hot = jax.nn.one_hot(labels, NUM_CLASSES, dtype=jnp.float32)
    base = -jnp.mean(jnp.sum(one_hot * jax.nn.log_softmax(s, axis=1), axis=1))
    t = jnp.dot(x, teacher_w, preferred_element_type=jnp.float32)
    t = t + teacher_b.astype(jnp.float32)
    T = tau
    log_p = jax.nn.log_softmax(one_hot / T, axis=1)
    log_q = jax.nn.log_softmax(t / T, axis=1)
    kl = jnp.sum(jnp.exp(log_q) * (log_q - log_p))
    return base + alpha * kl * (T * T) / (batch * NUM_CLASSES)


if __name__ == "__main__":
    key = jax.random.PRNGKey(0)
    k_in, k_out, k_lab, k_w, k_b = jax.random.split(key, 5)

    # small shapes: batch=2, channels=4, spatial=16x16  ->  D = 1024
    B, C, H, W = 2, 4, 16, 16
    D = C * H * W
    alpha, tau = 0.5, 2.0

    # Big streamed operands stay bf16 end-to-end (no f32 up-cast on the HBM side).
    inputs = jax.random.normal(k_in, (B, C, H, W), jnp.float32).astype(jnp.bfloat16)
    outputs = jax.random.normal(k_out, (B, NUM_CLASSES), jnp.float32)
    labels = jax.random.randint(k_lab, (B,), 0, NUM_CLASSES, dtype=jnp.int32)

    # deterministic synthetic teacher: Linear(D -> 60), bf16 weight
    teacher_w = (jax.random.normal(k_w, (D, NUM_CLASSES), jnp.float32)
                 * (1.0 / math.sqrt(D))).astype(jnp.bfloat16)
    teacher_b = jax.random.normal(k_b, (NUM_CLASSES,), jnp.float32) * 0.01

    # Padding of teacher params happens once at setup (hoisted out of the hot path).
    w_pad, b_pad = prepare_teacher_params(teacher_w, teacher_b)

    loss = discrimination_loss2(inputs, outputs, labels, w_pad, b_pad,
                                alpha=alpha, tau=tau)
    loss = jax.block_until_ready(loss)

    ref = _reference(inputs, outputs, labels, teacher_w, teacher_b,
                     alpha=alpha, tau=tau)
    assert jnp.allclose(loss, ref, rtol=1e-3, atol=1e-3), (loss, ref)

    print("KERNEL_OK")
</pallas_src>

<mosaic_0001>
module attributes {stable_mosaic.version = 11 : i64} {
  func.func @_disc_loss2_kernel(%arg0: i32, %arg1: i32, %arg2: memref<8x1024xbf16, #tpu.memory_space<vmem>>, %arg3: memref<1024x128xbf16, #tpu.memory_space<vmem>>, %arg4: memref<1x128xf32, #tpu.memory_space<vmem>>, %arg5: memref<8x128xf32, #tpu.memory_space<vmem>>, %arg6: memref<8x1xi32, #tpu.memory_space<vmem>>, %arg7: memref<1x1x128xf32, #tpu.memory_space<vmem>>, %arg8: memref<8x128xf32, #tpu.memory_space<vmem>>) attributes {dimension_semantics = [#tpu.dimension_semantics<parallel>, #tpu.dimension_semantics<arbitrary>], iteration_bounds = array<i64: 1, 1>, scalar_prefetch = 0 : i64, scratch_operands = 1 : i64, tpu.core_type = #tpu.core_type<tc>, window_params = [{transform_indices = @transform_0, window_bounds = array<i64: 8, 1024>}, {pipeline_mode = #tpu.pipeline_mode<synchronous>, transform_indices = @transform_1, window_bounds = array<i64: 1024, 128>}, {pipeline_mode = #tpu.pipeline_mode<synchronous>, transform_indices = @transform_2, window_bounds = array<i64: 1, 128>}, {transform_indices = @transform_3, window_bounds = array<i64: 8, 128>}, {transform_indices = @transform_4, window_bounds = array<i64: 8, 1>}, {transform_indices = @transform_5, window_bounds = array<i64: 1, 1, 128>}]} {
    %c0_i32 = arith.constant 0 : i32
    %0 = arith.cmpi eq, %arg1, %c0_i32 : i32
    %1 = arith.extui %0 : i1 to i32
    %c0_i32_0 = arith.constant 0 : i32
    %2 = arith.cmpi ne, %1, %c0_i32_0 : i32
    scf.if %2 {
      %cst_9 = arith.constant 0.000000e+00 : f32
      %15 = vector.broadcast %cst_9 : f32 to vector<8x128xf32>
      %c0_10 = arith.constant 0 : index
      %c0_11 = arith.constant 0 : index
      %16 = vector.load %arg8[%c0_10, %c0_11] : memref<8x128xf32, #tpu.memory_space<vmem>>, vector<8x128xf32>
      tpu.vector_store %arg8[%c0_10, %c0_11], %15 {strides = array<i32>} : memref<8x128xf32, #tpu.memory_space<vmem>>, vector<8x128xf32>,
    } else {
    }
    %c1024_i32 = arith.constant 1024 : i32
    %3 = arith.muli %arg1, %c1024_i32 : i32
    %4 = tpu.assume_multiple %3, 128 : i32
    %5 = arith.index_cast %4 : i32 to index
    %c0 = arith.constant 0 : index
    %6 = vector.load %arg3[%5, %c0] : memref<1024x128xbf16, #tpu.memory_space<vmem>>, vector<1024x128xbf16>
    %c0_1 = arith.constant 0 : index
    %c0_2 = arith.constant 0 : index
    %7 = vector.load %arg8[%c0_1, %c0_2] : memref<8x128xf32, #tpu.memory_space<vmem>>, vector<8x128xf32>
    %c0_3 = arith.constant 0 : index
    %c0_4 = arith.constant 0 : index
    %8 = vector.load %arg2[%c0_3, %c0_4] : memref<8x1024xbf16, #tpu.memory_space<vmem>>, vector<8x1024xbf16>
    %cst = arith.constant dense<0.000000e+00> : vector<8x128xf32>
    %9 = tpu.matmul %8, %6, %cst {dimension_numbers = #tpu.dot_dimension_numbers<[1], [0], [0], [1], [0, 0, 1, 1], [], []>} : vector<8x1024xbf16>, vector<1024x128xbf16>, vector<8x128xf32> -> vector<8x128xf32>
    %10 = arith.addf %7, %9 : vector<8x128xf32>
    %c0_5 = arith.constant 0 : index
    %c0_6 = arith.constant 0 : index
    %11 = vector.load %arg8[%c0_5, %c0_6] : memref<8x128xf32, #tpu.memory_space<vmem>>, vector<8x128xf32>
    tpu.vector_store %arg8[%c0_5, %c0_6], %10 {strides = array<i32>} : memref<8x128xf32, #tpu.memory_space<vmem>>, vector<8x128xf32>,
    %c0_i32_7 = arith.constant 0 : i32
    %12 = arith.cmpi eq, %arg1, %c0_i32_7 : i32
    %13 = arith.extui %12 : i1 to i32
    %c0_i32_8 = arith.constant 0 : i32
    %14 = arith.cmpi ne, %13, %c0_i32_8 : i32
    scf.if %14 {
      %15 = tpu.iota {dimensions = array<i32: 1>} : vector<8x128xi32>
      %c60_i32 = arith.constant 60 : i32
      %16 = vector.broadcast %c60_i32 : i32 to vector<8x128xi32>
      %17 = arith.cmpi slt, %15, %16 : vector<8x128xi32>
      %18 = tpu.iota {dimensions = array<i32: 0>} : vector<8x1xi32>
      %c8_i32 = arith.constant 8 : i32
      %19 = arith.muli %arg0, %c8_i32 : i32
      %20 = vector.broadcast %19 : i32 to vector<8x1xi32>
      %21 = arith.addi %18, %20 : vector<8x1xi32>
      %c2_i32 = arith.constant 2 : i32
      %22 = vector.broadcast %c2_i32 : i32 to vector<8x1xi32>
      %23 = arith.cmpi slt, %21, %22 : vector<8x1xi32>
      %24 = arith.extui %23 : vector<8x1xi1> to vector<8x1xi32>
      %25 = arith.sitofp %24 : vector<8x1xi32> to vector<8x1xf32>
      %c0_9 = arith.constant 0 : index
      %c0_10 = arith.constant 0 : index
      %26 = vector.load %arg8[%c0_9, %c0_10] : memref<8x128xf32, #tpu.memory_space<vmem>>, vector<8x128xf32>
      %c0_11 = arith.constant 0 : index
      %c0_12 = arith.constant 0 : index
      %27 = vector.load %arg4[%c0_11, %c0_12] : memref<1x128xf32, #tpu.memory_space<vmem>>, vector<1x128xf32>
      %28 = vector.broadcast %27 : vector<1x128xf32> to vector<8x128xf32>
      %29 = arith.addf %26, %28 : vector<8x128xf32>
      %c0_13 = arith.constant 0 : index
      %c0_14 = arith.constant 0 : index
      %30 = vector.load %arg5[%c0_13, %c0_14] : memref<8x128xf32, #tpu.memory_space<vmem>>, vector<8x128xf32>
      %c0_15 = arith.constant 0 : index
      %c0_16 = arith.constant 0 : index
      %31 = vector.load %arg6[%c0_15, %c0_16] : memref<8x1xi32, #tpu.memory_space<vmem>>, vector<8x1xi32>
      %32 = vector.broadcast %31 : vector<8x1xi32> to vector<8x128xi32>
      %33 = arith.cmpi eq, %15, %32 : vector<8x128xi32>
      %34 = arith.extui %33 : vector<8x128xi1> to vector<8x128xi32>
      %35 = arith.sitofp %34 : vector<8x128xi32> to vector<8x128xf32>
      %cst_17 = arith.constant -1.000000e+30 : f32
      %36 = vector.broadcast %cst_17 : f32 to vector<8x128xf32>
      %37 = arith.select %17, %30, %36 : vector<8x128xi1>, vector<8x128xf32>
      %cst_18 = arith.constant dense<0xFF800000> : vector<8xf32>
      %38 = vector.multi_reduction <maximumf>, %37, %cst_18 [1] : vector<8x128xf32> to vector<8xf32>
      %39 = vector.shape_cast %38 : vector<8xf32> to vector<8x1xf32>
      %40 = vector.broadcast %39 : vector<8x1xf32> to vector<8x128xf32>
      %41 = arith.subf %37, %40 : vector<8x128xf32>
      %42 = math.exp %41 : vector<8x128xf32>
      %cst_19 = arith.constant dense<0.000000e+00> : vector<8xf32>
      %43 = vector.multi_reduction <add>, %42, %cst_19 [1] : vector<8x128xf32> to vector<8xf32>
      %44 = vector.shape_cast %43 : vector<8xf32> to vector<8x1xf32>
      %45 = math.log %44 : vector<8x1xf32>
      %46 = arith.addf %39, %45 : vector<8x1xf32>
      %47 = arith.mulf %35, %30 : vector<8x128xf32>
      %cst_20 = arith.constant dense<0.000000e+00> : vector<8xf32>
      %48 = vector.multi_reduction <add>, %47, %cst_20 [1] : vector<8x128xf32> to vector<8xf32>
      %49 = vector.shape_cast %48 : vector<8xf32> to vector<8x1xf32>
      %50 = arith.subf %46, %49 : vector<8x1xf32>
      %51 = arith.mulf %25, %50 : vector<8x1xf32>
      %52 = vector.shape_cast %51 : vector<8x1xf32> to vector<1x8x1xf32>
      %cst_21 = arith.constant dense<0.000000e+00> : vector<1xf32>
      %53 = vector.multi_reduction <add>, %52, %cst_21 [1, 2] : vector<1x8x1xf32> to vector<1xf32>
      %54 = vector.shape_cast %53 : vector<1xf32> to vector<1x1x1xf32>
      %55 = vector.extract %54[0, 0, 0] : f32 from vector<1x1x1xf32>
      %56 = vector.broadcast %55 : f32 to vector<1x1xf32>
      %cst_22 = arith.constant 5.000000e-01 : f32
      %57 = vector.broadcast %cst_22 : f32 to vector<8x128xf32>
      %58 = arith.mulf %35, %57 : vector<8x128xf32>
      %cst_23 = arith.constant 4.10509872 : f32
      %59 = vector.broadcast %cst_23 : f32 to vector<8x128xf32>
      %60 = arith.subf %58, %59 : vector<8x128xf32>
      %cst_24 = arith.constant 5.000000e-01 : f32
      %61 = vector.broadcast %cst_24 : f32 to vector<8x128xf32>
      %62 = arith.mulf %29, %61 : vector<8x128xf32>
      %cst_25 = arith.constant -1.000000e+30 : f32
      %63 = vector.broadcast %cst_25 : f32 to vector<8x128xf32>
      %64 = arith.select %17, %62, %63 : vector<8x128xi1>, vector<8x128xf32>
      %cst_26 = arith.constant dense<0xFF800000> : vector<8xf32>
      %65 = vector.multi_reduction <maximumf>, %64, %cst_26 [1] : vector<8x128xf32> to vector<8xf32>
      %66 = vector.shape_cast %65 : vector<8xf32> to vector<8x1xf32>
      %67 = vector.broadcast %66 : vector<8x1xf32> to vector<8x128xf32>
      %68 = arith.subf %64, %67 : vector<8x128xf32>
      %69 = math.exp %68 : vector<8x128xf32>
      %cst_27 = arith.constant dense<0.000000e+00> : vector<8xf32>
      %70 = vector.multi_reduction <add>, %69, %cst_27 [1] : vector<8x128xf32> to vector<8xf32>
      %71 = vector.shape_cast %70 : vector<8xf32> to vector<8x1xf32>
      %72 = math.log %71 : vector<8x1xf32>
      %73 = arith.addf %66, %72 : vector<8x1xf32>
      %74 = vector.broadcast %73 : vector<8x1xf32> to vector<8x128xf32>
      %75 = arith.subf %64, %74 : vector<8x128xf32>
      %76 = math.exp %75 : vector<8x128xf32>
      %77 = arith.subf %75, %60 : vector<8x128xf32>
      %78 = arith.mulf %76, %77 : vector<8x128xf32>
      %cst_28 = arith.constant 0.000000e+00 : f32
      %79 = vector.broadcast %cst_28 : f32 to vector<8x128xf32>
      %80 = arith.select %17, %78, %79 : vector<8x128xi1>, vector<8x128xf32>
      %cst_29 = arith.constant dense<0.000000e+00> : vector<8xf32>
      %81 = vector.multi_reduction <add>, %80, %cst_29 [1] : vector<8x128xf32> to vector<8xf32>
      %82 = vector.shape_cast %81 : vector<8xf32> to vector<8x1xf32>
      %83 = arith.mulf %25, %82 : vector<8x1xf32>
      %84 = vector.shape_cast %83 : vector<8x1xf32> to vector<1x8x1xf32>
      %cst_30 = arith.constant dense<0.000000e+00> : vector<1xf32>
      %85 = vector.multi_reduction <add>, %84, %cst_30 [1, 2] : vector<1x8x1xf32> to vector<1xf32>
      %86 = vector.shape_cast %85 : vector<1xf32> to vector<1x1x1xf32>
      %87 = vector.extract %86[0, 0, 0] : f32 from vector<1x1x1xf32>
      %88 = vector.broadcast %87 : f32 to vector<1x1xf32>
      %89 = tpu.iota {dimensions = array<i32: 2>} : vector<1x1x128xi32>
      %c0_i32_31 = arith.constant 0 : i32
      %90 = vector.broadcast %c0_i32_31 : i32 to vector<1x1x128xi32>
      %91 = arith.cmpi eq, %89, %90 : vector<1x1x128xi32>
      %c1_i32 = arith.constant 1 : i32
      %92 = vector.broadcast %c1_i32 : i32 to vector<1x1x128xi32>
      %93 = arith.cmpi eq, %89, %92 : vector<1x1x128xi32>
      %cst_32 = arith.constant 0.000000e+00 : f32
      %94 = vector.shape_cast %88 : vector<1x1xf32> to vector<1x1x1xf32>
      %95 = vector.broadcast %94 : vector<1x1x1xf32> to vector<1x1x128xf32>
      %96 = vector.broadcast %cst_32 : f32 to vector<1x1x128xf32>
      %97 = arith.select %93, %95, %96 : vector<1x1x128xi1>, vector<1x1x128xf32>
      %98 = vector.shape_cast %56 : vector<1x1xf32> to vector<1x1x1xf32>
      %99 = vector.broadcast %98 : vector<1x1x1xf32> to vector<1x1x128xf32>
      %100 = arith.select %91, %99, %97 : vector<1x1x128xi1>, vector<1x1x128xf32>
      %c0_33 = arith.constant 0 : index
      %c0_34 = arith.constant 0 : index
      %c0_35 = arith.constant 0 : index
      %101 = vector.load %arg7[%c0_33, %c0_34, %c0_35] : memref<1x1x128xf32, #tpu.memory_space<vmem>>, vector<1x1x128xf32>
      tpu.vector_store %arg7[%c0_33, %c0_34, %c0_35], %100 {strides = array<i32>} : memref<1x1x128xf32, #tpu.memory_space<vmem>>, vector<1x1x128xf32>,
    } else {
    }
    return
  }
  func.func @transform_0(%arg0: i32, %arg1: i32) -> (i32, i32) {
    %c0_i32 = arith.constant 0 : i32
    return %arg0, %arg1 : i32, i32
  }
  func.func @transform_1(%arg0: i32, %arg1: i32) -> (i32, i32) {
    %c0_i32 = arith.constant 0 : i32
    %c0_i32_0 = arith.constant 0 : i32
    %c0_i32_1 = arith.constant 0 : i32
    return %c0_i32, %c0_i32_0 : i32, i32
  }
  func.func @transform_2(%arg0: i32, %arg1: i32) -> (i32, i32) {
    %c0_i32 = arith.constant 0 : i32
    %c0_i32_0 = arith.constant 0 : i32
    %c0_i32_1 = arith.constant 0 : i32
    return %c0_i32, %c0_i32_0 : i32, i32
  }
  func.func @transform_3(%arg0: i32, %arg1: i32) -> (i32, i32) {
    %c0_i32 = arith.constant 0 : i32
    %c0_i32_0 = arith.constant 0 : i32
    return %arg0, %c0_i32 : i32, i32
  }
  func.func @transform_4(%arg0: i32, %arg1: i32) -> (i32, i32) {
    %c0_i32 = arith.constant 0 : i32
    %c0_i32_0 = arith.constant 0 : i32
    return %arg0, %c0_i32 : i32, i32
  }
  func.func @transform_5(%arg0: i32, %arg1: i32) -> (i32, i32, i32) {
    %c0_i32 = arith.constant 0 : i32
    %c0_i32_0 = arith.constant 0 : i32
    %c0_i32_1 = arith.constant 0 : i32
    return %arg0, %c0_i32, %c0_i32_0 : i32, i32, i32
  }
}

</mosaic_0001>

<llo_original>
// kernel: tpu_custom_call.1
$region0: #{tpu_custom_call.1}
  #allocation0 [shape = 'u32[]', space=smem, size = 0x4, offset = 0x4, fixed_abs, tag = 'smem constant byte address 0x4 - core index']
  #allocation1 [shape = 'u32[144,128]{1,0:T(1,128)}', space=vmem, size = 0x12000, scoped, tag = 'internal scratch']
  #allocation2 [shape = 'f32[8,128]{1,0:T(8,128)}', space=vmem, size = 0x1000, scoped, tag = 'scratch operand']
  %s0 = inlined_call_operand.hbm [shape: bf16[8,1024], index: 0, kind: input, shape index: {}]
  %s1 = inlined_call_operand.hbm [shape: bf16[1024,128], index: 1, kind: input, shape index: {}]
  %s2 = inlined_call_operand.vmem [shape: f32[1,128], index: 2, kind: input, shape index: {}]
  %s3 = inlined_call_operand.vmem [shape: f32[8,128], index: 3, kind: input, shape index: {}]
  %s4 = inlined_call_operand.vmem [shape: s32[8,1], index: 4, kind: input, shape index: {}]
  %s5 = inlined_call_operand.hbm [shape: f32[1,1,128], index: 5, kind: output, shape index: {}]
  %s6 = sld [smem:[#allocation0]]
  $region46: #{tpu_custom_call.1} parent=0
    _
  %s8 = ssub.s32 1, %s6
  %s9 = scalar_select 0, %s8, %s6
  $region1: #{tpu_custom_call.1} parent=0
    #allocation3 [shape = 'u8[16384]{0}', space=vmem, size = 0x4000, scoped, tag = 'input window, operand 0, single buffered']
    #allocation4 [shape = 's32[1]{0}', space=sflag, size = 0x4, scoped, tag = 'scoped memory for tpu_custom_call.1']
    #allocation5 [shape = 's32[1]{0}', space=sflag, size = 0x4, scoped, tag = 'scoped memory for tpu_custom_call.1']
    #allocation6 [shape = 'u8[262144]{0}', space=vmem, size = 0x40000, scoped, tag = 'input window, operand 1, single buffered']
    #allocation7 [shape = 's32[1]{0}', space=sflag, size = 0x4, scoped, tag = 'scoped memory for tpu_custom_call.1']
    #allocation8 [shape = 'u8[512]{0}', space=vmem, size = 0x400, scoped, tag = 'output window, operand 0, single buffered']
    %10 = vsyncpa [#allocation4], 0
    %11 = vsyncpa [#allocation7], 0
    %12 = vsyncpa [#allocation5], 0
    // Predicated region
    $region2: #{tpu_custom_call.1} parent=1 // pred_check
      _
    $region3: #{tpu_custom_call.1} parent=1 // pred_check_branch
      %14 = sbr.rel (0) target = $region5
    $region4: #{tpu_custom_call.1} parent=1 // pred_region
      %s16 = ssub.s32 512, 512
      %17 = vsyncadd [#allocation4], %s16
      %s19 = sshll.u32 [#allocation3], 4
      %s20 = int_to_ptr.vmem [resolvable:$true] %s19
      %22 = dma.hbm_to_vmem [thread:$0]  %s0, 512, %s20, [#allocation4]
    $region5: #{tpu_custom_call.1} parent=1 // pred_fallthru
      _
    // Predicated region
    $region6: #{tpu_custom_call.1} parent=1 // pred_check
      _
    $region7: #{tpu_custom_call.1} parent=1 // pred_check_branch
      %24 = sbr.rel (0) target = $region9
    $region8: #{tpu_custom_call.1} parent=1 // pred_region
      %s26 = ssub.s32 8192, 8192
      %27 = vsyncadd [#allocation7], %s26
      %s28 = sshll.u32 [#allocation6], 4
      %s29 = int_to_ptr.vmem [resolvable:$true] %s28
      %34 = dma.hbm_to_vmem [thread:$0]  %s1, 8192, %s29, [#allocation7], 64, 64, 4
    $region9: #{tpu_custom_call.1} parent=1 // pred_fallthru
      _
    // Predicated region
    $region10: #{tpu_custom_call.1} parent=1 // pred_check
      _
    $region11: #{tpu_custom_call.1} parent=1 // pred_check_branch
      %36 = sbr.rel (0) target = $region13
    $region12: #{tpu_custom_call.1} parent=1 // pred_region
      _
    $region13: #{tpu_custom_call.1} parent=1 // pred_fallthru
      _
    // Predicated region
    $region14: #{tpu_custom_call.1} parent=1 // pred_check
      _
    $region15: #{tpu_custom_call.1} parent=1 // pred_check_branch
      %38 = sbr.rel (0) target = $region17
    $region16: #{tpu_custom_call.1} parent=1 // pred_region
      _
    $region17: #{tpu_custom_call.1} parent=1 // pred_fallthru
      _
    // Predicated region
    $region18: #{tpu_custom_call.1} parent=1 // pred_check
      _
    $region19: #{tpu_custom_call.1} parent=1 // pred_check_branch
      %40 = sbr.rel (0) target = $region21
    $region20: #{tpu_custom_call.1} parent=1 // pred_region
      _
    $region21: #{tpu_custom_call.1} parent=1 // pred_fallthru
      _
    // Predicated region
    $region22: #{tpu_custom_call.1} parent=1 // pred_check
      _
    $region23: #{tpu_custom_call.1} parent=1 // pred_check_branch
      %42 = sbr.rel (0) target = $region25
    $region24: #{tpu_custom_call.1} parent=1 // pred_region
      %43 = dma.done [#allocation4], 512
    $region25: #{tpu_custom_call.1} parent=1 // pred_fallthru
      _
    // Predicated region
    $region26: #{tpu_custom_call.1} parent=1 // pred_check
      _
    $region27: #{tpu_custom_call.1} parent=1 // pred_check_branch
      %45 = sbr.rel (0) target = $region29
    $region28: #{tpu_custom_call.1} parent=1 // pred_region
      %46 = dma.done [#allocation7], 8192
    $region29: #{tpu_custom_call.1} parent=1 // pred_fallthru
      _
    %p48 = scmp.eq.s32.totalorder 0, 0
    // Predicated region
    $region30: #{tpu_custom_call.1} parent=1 // pred_check
      %p49 = pneg %p48
    $region31: #{tpu_custom_call.1} parent=1 // pred_check_branch
      %51 = sbr.rel (%p49) target = $region33
    $region32: #{tpu_custom_call.1} parent=1 // pred_region
      %52 = vst [vmem:[#allocation2] sm:$0xff] 0.0
    $region33: #{tpu_custom_call.1} parent=1 // pred_fallthru
      _
    %s53 = smul.u32 0, 1024
    %s54 = sshra.s32 %s53, 3
    %s55 = sand.u32 %s53, 7
    %s56 = smul.addr %s54, 4
    %s57 = scalar_lea.vmem [#allocation6], %s56
    %v58 = vld [vmem:[%s57] sm:$0xf]
    %v59 = vld [vmem:[%s57 + $0x4] sm:$0xf]
    %v60 = vld [vmem:[%s57 + $0x8] sm:$0xf]
    %v61 = vld [vmem:[%s57 + $0xc] sm:$0xf]
    %v62 = vld [vmem:[%s57 + $0x10] sm:$0xf]
    %v63 = vld [vmem:[%s57 + $0x14] sm:$0xf]
    %v64 = vld [vmem:[%s57 + $0x18] sm:$0xf]
    %v65 = vld [vmem:[%s57 + $0x1c] sm:$0xf]
    %v66 = vld [vmem:[%s57 + $0x20] sm:$0xf]
    %v67 = vld [vmem:[%s57 + $0x24] sm:$0xf]
    %v68 = vld [vmem:[%s57 + $0x28] sm:$0xf]
    %v69 = vld [vmem:[%s57 + $0x2c] sm:$0xf]
    %v70 = vld [vmem:[%s57 + $0x30] sm:$0xf]
    %v71 = vld [vmem:[%s57 + $0x34] sm:$0xf]
    %v72 = vld [vmem:[%s57 + $0x38] sm:$0xf]
    %v73 = vld [vmem:[%s57 + $0x3c] sm:$0xf]
    %v74 = vld [vmem:[%s57 + $0x40] sm:$0xf]
    %v75 = vld [vmem:[%s57 + $0x44] sm:$0xf]
    %v76 = vld [vmem:[%s57 + $0x48] sm:$0xf]
    %v77 = vld [vmem:[%s57 + $0x4c] sm:$0xf]
    %v78 = vld [vmem:[%s57 + $0x50] sm:$0xf]
    %v79 = vld [vmem:[%s57 + $0x54] sm:$0xf]
    %v80 = vld [vmem:[%s57 + $0x58] sm:$0xf]
    %v81 = vld [vmem:[%s57 + $0x5c] sm:$0xf]
    %v82 = vld [vmem:[%s57 + $0x60] sm:$0xf]
    %v83 = vld [vmem:[%s57 + $0x64] sm:$0xf]
    %v84 = vld [vmem:[%s57 + $0x68] sm:$0xf]
    %v85 = vld [vmem:[%s57 + $0x6c] sm:$0xf]
    %v86 = vld [vmem:[%s57 + $0x70] sm:$0xf]
    %v87 = vld [vmem:[%s57 + $0x74] sm:$0xf]
    %v88 = vld [vmem:[%s57 + $0x78] sm:$0xf]
    %v89 = vld [vmem:[%s57 + $0x7c] sm:$0xf]
    %v90 = vld [vmem:[%s57 + $0x80] sm:$0xf]
    %v91 = vld [vmem:[%s57 + $0x84] sm:$0xf]
    %v92 = vld [vmem:[%s57 + $0x88] sm:$0xf]
    %v93 = vld [vmem:[%s57 + $0x8c] sm:$0xf]
    %v94 = vld [vmem:[%s57 + $0x90] sm:$0xf]
    %v95 = vld [vmem:[%s57 + $0x94] sm:$0xf]
    %v96 = vld [vmem:[%s57 + $0x98] sm:$0xf]
    %v97 = vld [vmem:[%s57 + $0x9c] sm:$0xf]
    %v98 = vld [vmem:[%s57 + $0xa0] sm:$0xf]
    %v99 = vld [vmem:[%s57 + $0xa4] sm:$0xf]
    %v100 = vld [vmem:[%s57 + $0xa8] sm:$0xf]
    %v101 = vld [vmem:[%s57 + $0xac] sm:$0xf]
    %v102 = vld [vmem:[%s57 + $0xb0] sm:$0xf]
    %v103 = vld [vmem:[%s57 + $0xb4] sm:$0xf]
    %v104 = vld [vmem:[%s57 + $0xb8] sm:$0xf]
    %v105 = vld [vmem:[%s57 + $0xbc] sm:$0xf]
    %v106 = vld [vmem:[%s57 + $0xc0] sm:$0xf]
    %v107 = vld [vmem:[%s57 + $0xc4] sm:$0xf]
    %v108 = vld [vmem:[%s57 + $0xc8] sm:$0xf]
    %v109 = vld [vmem:[%s57 + $0xcc] sm:$0xf]
    %v110 = vld [vmem:[%s57 + $0xd0] sm:$0xf]
    %v111 = vld [vmem:[%s57 + $0xd4] sm:$0xf]
    %v112 = vld [vmem:[%s57 + $0xd8] sm:$0xf]
    %v113 = vld [vmem:[%s57 + $0xdc] sm:$0xf]
    %v114 = vld [vmem:[%s57 + $0xe0] sm:$0xf]
    %v115 = vld [vmem:[%s57 + $0xe4] sm:$0xf]
    %v116 = vld [vmem:[%s57 + $0xe8] sm:$0xf]
    %v117 = vld [vmem:[%s57 + $0xec] sm:$0xf]
    %v118 = vld [vmem:[%s57 + $0xf0] sm:$0xf]
    %v119 = vld [vmem:[%s57 + $0xf4] sm:$0xf]
    %v120 = vld [vmem:[%s57 + $0xf8] sm:$0xf]
    %v121 = vld [vmem:[%s57 + $0xfc] sm:$0xf]
    %v122 = vld [vmem:[%s57 + $0x100] sm:$0xf]
    %v123 = vld [vmem:[%s57 + $0x104] sm:$0xf]
    %v124 = vld [vmem:[%s57 + $0x108] sm:$0xf]
    %v125 = vld [vmem:[%s57 + $0x10c] sm:$0xf]
    %v126 = vld [vmem:[%s57 + $0x110] sm:$0xf]
    %v127 = vld [vmem:[%s57 + $0x114] sm:$0xf]
    %v128 = vld [vmem:[%s57 + $0x118] sm:$0xf]
    %v129 = vld [vmem:[%s57 + $0x11c] sm:$0xf]
    %v130 = vld [vmem:[%s57 + $0x120] sm:$0xf]
    %v131 = vld [vmem:[%s57 + $0x124] sm:$0xf]
    %v132 = vld [vmem:[%s57 + $0x128] sm:$0xf]
    %v133 = vld [vmem:[%s57 + $0x12c] sm:$0xf]
    %v134 = vld [vmem:[%s57 + $0x130] sm:$0xf]
    %v135 = vld [vmem:[%s57 + $0x134] sm:$0xf]
    %v136 = vld [vmem:[%s57 + $0x138] sm:$0xf]
    %v137 = vld [vmem:[%s57 + $0x13c] sm:$0xf]
    %v138 = vld [vmem:[%s57 + $0x140] sm:$0xf]
    %v139 = vld [vmem:[%s57 + $0x144] sm:$0xf]
    %v140 = vld [vmem:[%s57 + $0x148] sm:$0xf]
    %v141 = vld [vmem:[%s57 + $0x14c] sm:$0xf]
    %v142 = vld [vmem:[%s57 + $0x150] sm:$0xf]
    %v143 = vld [vmem:[%s57 + $0x154] sm:$0xf]
    %v144 = vld [vmem:[%s57 + $0x158] sm:$0xf]
    %v145 = vld [vmem:[%s57 + $0x15c] sm:$0xf]
    %v146 = vld [vmem:[%s57 + $0x160] sm:$0xf]
    %v147 = vld [vmem:[%s57 + $0x164] sm:$0xf]
    %v148 = vld [vmem:[%s57 + $0x168] sm:$0xf]
    %v149 = vld [vmem:[%s57 + $0x16c] sm:$0xf]
    %v150 = vld [vmem:[%s57 + $0x170] sm:$0xf]
    %v151 = vld [vmem:[%s57 + $0x174] sm:$0xf]
    %v152 = vld [vmem:[%s57 + $0x178] sm:$0xf]
    %v153 = vld [vmem:[%s57 + $0x17c] sm:$0xf]
    %v154 = vld [vmem:[%s57 + $0x180] sm:$0xf]
    %v155 = vld [vmem:[%s57 + $0x184] sm:$0xf]
    %v156 = vld [vmem:[%s57 + $0x188] sm:$0xf]
    %v157 = vld [vmem:[%s57 + $0x18c] sm:$0xf]
    %v158 = vld [vmem:[%s57 + $0x190] sm:$0xf]
    %v159 = vld [vmem:[%s57 + $0x194] sm:$0xf]
    %v160 = vld [vmem:[%s57 + $0x198] sm:$0xf]
    %v161 = vld [vmem:[%s57 + $0x19c] sm:$0xf]
    %v162 = vld [vmem:[%s57 + $0x1a0] sm:$0xf]
    %v163 = vld [vmem:[%s57 + $0x1a4] sm:$0xf]
    %v164 = vld [vmem:[%s57 + $0x1a8] sm:$0xf]
    %v165 = vld [vmem:[%s57 + $0x1ac] sm:$0xf]
    %v166 = vld [vmem:[%s57 + $0x1b0] sm:$0xf]
    %v167 = vld [vmem:[%s57 + $0x1b4] sm:$0xf]
    %v168 = vld [vmem:[%s57 + $0x1b8] sm:$0xf]
    %v169 = vld [vmem:[%s57 + $0x1bc] sm:$0xf]
    %v170 = vld [vmem:[%s57 + $0x1c0] sm:$0xf]
    %v171 = vld [vmem:[%s57 + $0x1c4] sm:$0xf]
    %v172 = vld [vmem:[%s57 + $0x1c8] sm:$0xf]
    %v173 = vld [vmem:[%s57 + $0x1cc] sm:$0xf]
    %v174 = vld [vmem:[%s57 + $0x1d0] sm:$0xf]
    %v175 = vld [vmem:[%s57 + $0x1d4] sm:$0xf]
    %v176 = vld [vmem:[%s57 + $0x1d8] sm:$0xf]
    %v177 = vld [vmem:[%s57 + $0x1dc] sm:$0xf]
    %v178 = vld [vmem:[%s57 + $0x1e0] sm:$0xf]
    %v179 = vld [vmem:[%s57 + $0x1e4] sm:$0xf]
    %v180 = vld [vmem:[%s57 + $0x1e8] sm:$0xf]
    %v181 = vld [vmem:[%s57 + $0x1ec] sm:$0xf]
    %v182 = vld [vmem:[%s57 + $0x1f0] sm:$0xf]
    %v183 = vld [vmem:[%s57 + $0x1f4] sm:$0xf]
    %v184 = vld [vmem:[%s57 + $0x1f8] sm:$0xf]
    %v185 = vld [vmem:[%s57 + $0x1fc] sm:$0xf]
    %v186 = vld [vmem:[#allocation2] sm:$0xff]
    %v187 = vld [vmem:[#allocation3] sm:$0xff]
    %v188 = vld [vmem:[#allocation3 + $0x8] sm:$0xff]
    %v189 = vld [vmem:[#allocation3 + $0x10] sm:$0xff]
    %v190 = vld [vmem:[#allocation3 + $0x18] sm:$0xff]
    %v195 = vunpack.c.l.b16 %v187
    %v196 = vunpack.c.h.b16 %v187
    %v197 = vunpack.c.l.b16 %v188
    %v198 = vunpack.c.h.b16 %v188
    %v199 = vunpack.c.l.b16 %v189
    %v200 = vunpack.c.h.b16 %v189
    %v201 = vunpack.c.l.b16 %v190
    %v202 = vunpack.c.h.b16 %v190
    %v203 = vpack.c.b16 %v195, %v195
    %v204 = vpack.c.b16 %v196, %v196
    %v205 = vpack.c.b16 %v197, %v197
    %v206 = vpack.c.b16 %v198, %v198
    %v207 = vpack.c.b16 %v199, %v199
    %v208 = vpack.c.b16 %v200, %v200
    %v209 = vpack.c.b16 %v201, %v201
    %v210 = vpack.c.b16 %v202, %v202
    %v347 = vunpack.c.l.b16 %v58
    %v348 = vunpack.c.l.b16 %v59
    %v349 = vunpack.c.l.b16 %v60
    %v350 = vunpack.c.l.b16 %v61
    %v351 = vunpack.c.l.b16 %v62
    %v352 = vunpack.c.l.b16 %v63
    %v353 = vunpack.c.l.b16 %v64
    %v354 = vunpack.c.l.b16 %v65
    %v355 = vunpack.c.l.b16 %v66
    %v356 = vunpack.c.l.b16 %v67
    %v357 = vunpack.c.l.b16 %v68
    %v358 = vunpack.c.l.b16 %v69
    %v359 = vunpack.c.l.b16 %v70
    %v360 = vunpack.c.l.b16 %v71
    %v361 = vunpack.c.l.b16 %v72
    %v362 = vunpack.c.l.b16 %v73
    %v363 = vunpack.c.l.b16 %v74
    %v364 = vunpack.c.l.b16 %v75
    %v365 = vunpack.c.l.b16 %v76
    %v366 = vunpack.c.l.b16 %v77
    %v367 = vunpack.c.l.b16 %v78
    %v368 = vunpack.c.l.b16 %v79
    %v369 = vunpack.c.l.b16 %v80
    %v370 = vunpack.c.l.b16 %v81
    %v371 = vunpack.c.l.b16 %v82
    %v372 = vunpack.c.l.b16 %v83
    %v373 = vunpack.c.l.b16 %v84
    %v374 = vunpack.c.l.b16 %v85
    %v375 = vunpack.c.l.b16 %v86
    %v376 = vunpack.c.l.b16 %v87
    %v377 = vunpack.c.l.b16 %v88
    %v378 = vunpack.c.l.b16 %v89
    %v379 = vunpack.c.l.b16 %v90
    %v380 = vunpack.c.l.b16 %v91
    %v381 = vunpack.c.l.b16 %v92
    %v382 = vunpack.c.l.b16 %v93
    %v383 = vunpack.c.l.b16 %v94
    %v384 = vunpack.c.l.b16 %v95
    %v385 = vunpack.c.l.b16 %v96
    %v386 = vunpack.c.l.b16 %v97
    %v387 = vunpack.c.l.b16 %v98
    %v388 = vunpack.c.l.b16 %v99
    %v389 = vunpack.c.l.b16 %v100
    %v390 = vunpack.c.l.b16 %v101
    %v391 = vunpack.c.l.b16 %v102
    %v392 = vunpack.c.l.b16 %v103
    %v393 = vunpack.c.l.b16 %v104
    %v394 = vunpack.c.l.b16 %v105
    %v395 = vunpack.c.l.b16 %v106
    %v396 = vunpack.c.l.b16 %v107
    %v397 = vunpack.c.l.b16 %v108
    %v398 = vunpack.c.l.b16 %v109
    %v399 = vunpack.c.l.b16 %v110
    %v400 = vunpack.c.l.b16 %v111
    %v401 = vunpack.c.l.b16 %v112
    %v402 = vunpack.c.l.b16 %v113
    %v403 = vunpack.c.l.b16 %v114
    %v404 = vunpack.c.l.b16 %v115
    %v405 = vunpack.c.l.b16 %v116
    %v406 = vunpack.c.l.b16 %v117
    %v407 = vunpack.c.l.b16 %v118
    %v408 = vunpack.c.l.b16 %v119
    %v409 = vunpack.c.l.b16 %v120
    %v410 = vunpack.c.l.b16 %v121
    %v411 = vunpack.c.l.b16 %v122
    %v412 = vunpack.c.l.b16 %v123
    %v413 = vunpack.c.l.b16 %v124
    %v414 = vunpack.c.l.b16 %v125
    %v415 = vunpack.c.l.b16 %v126
    %v416 = vunpack.c.l.b16 %v127
    %v417 = vunpack.c.l.b16 %v128
    %v418 = vunpack.c.l.b16 %v129
    %v419 = vunpack.c.l.b16 %v130
    %v420 = vunpack.c.l.b16 %v131
    %v421 = vunpack.c.l.b16 %v132
    %v422 = vunpack.c.l.b16 %v133
    %v423 = vunpack.c.l.b16 %v134
    %v424 = vunpack.c.l.b16 %v135
    %v425 = vunpack.c.l.b16 %v136
    %v426 = vunpack.c.l.b16 %v137
    %v427 = vunpack.c.l.b16 %v138
    %v428 = vunpack.c.l.b16 %v139
    %v429 = vunpack.c.l.b16 %v140
    %v430 = vunpack.c.l.b16 %v141
    %v431 = vunpack.c.l.b16 %v142
    %v432 = vunpack.c.l.b16 %v143
    %v433 = vunpack.c.l.b16 %v144
    %v434 = vunpack.c.l.b16 %v145
    %v435 = vunpack.c.l.b16 %v146
    %v436 = vunpack.c.l.b16 %v147
    %v437 = vunpack.c.l.b16 %v148
    %v438 = vunpack.c.l.b16 %v149
    %v439 = vunpack.c.l.b16 %v150
    %v440 = vunpack.c.l.b16 %v151
    %v441 = vunpack.c.l.b16 %v152
    %v442 = vunpack.c.l.b16 %v153
    %v443 = vunpack.c.l.b16 %v154
    %v444 = vunpack.c.l.b16 %v155
    %v445 = vunpack.c.l.b16 %v156
    %v446 = vunpack.c.l.b16 %v157
    %v447 = vunpack.c.l.b16 %v158
    %v448 = vunpack.c.l.b16 %v159
    %v449 = vunpack.c.l.b16 %v160
    %v450 = vunpack.c.l.b16 %v161
    %v451 = vunpack.c.l.b16 %v162
    %v452 = vunpack.c.l.b16 %v163
    %v453 = vunpack.c.l.b16 %v164
    %v454 = vunpack.c.l.b16 %v165
    %v455 = vunpack.c.l.b16 %v166
    %v456 = vunpack.c.l.b16 %v167
    %v457 = vunpack.c.l.b16 %v168
    %v458 = vunpack.c.l.b16 %v169
    %v459 = vunpack.c.l.b16 %v170
    %v460 = vunpack.c.l.b16 %v171
    %v461 = vunpack.c.l.b16 %v172
    %v462 = vunpack.c.l.b16 %v173
    %v463 = vunpack.c.l.b16 %v174
    %v464 = vunpack.c.l.b16 %v175
    %v465 = vunpack.c.l.b16 %v176
    %v466 = vunpack.c.l.b16 %v177
    %v467 = vunpack.c.l.b16 %v178
    %v468 = vunpack.c.l.b16 %v179
    %v469 = vunpack.c.l.b16 %v180
    %v470 = vunpack.c.l.b16 %v181
    %v471 = vunpack.c.l.b16 %v182
    %v472 = vunpack.c.l.b16 %v183
    %v473 = vunpack.c.l.b16 %v184
    %v474 = vunpack.c.l.b16 %v185
    %v475 = vpack.c.b16 %v348, %v347
    %v476 = vpack.c.b16 %v350, %v349
    %v477 = vpack.c.b16 %v352, %v351
    %v478 = vpack.c.b16 %v354, %v353
    %v479 = vpack.c.b16 %v356, %v355
    %v480 = vpack.c.b16 %v358, %v357
    %v481 = vpack.c.b16 %v360, %v359
    %v482 = vpack.c.b16 %v362, %v361
    %v483 = vpack.c.b16 %v364, %v363
    %v484 = vpack.c.b16 %v366, %v365
    %v485 = vpack.c.b16 %v368, %v367
    %v486 = vpack.c.b16 %v370, %v369
    %v487 = vpack.c.b16 %v372, %v371
    %v488 = vpack.c.b16 %v374, %v373
    %v489 = vpack.c.b16 %v376, %v375
    %v490 = vpack.c.b16 %v378, %v377
    %v491 = vpack.c.b16 %v380, %v379
    %v492 = vpack.c.b16 %v382, %v381
    %v493 = vpack.c.b16 %v384, %v383
    %v494 = vpack.c.b16 %v386, %v385
    %v495 = vpack.c.b16 %v388, %v387
    %v496 = vpack.c.b16 %v390, %v389
    %v497 = vpack.c.b16 %v392, %v391
    %v498 = vpack.c.b16 %v394, %v393
    %v499 = vpack.c.b16 %v396, %v395
    %v500 = vpack.c.b16 %v398, %v397
    %v501 = vpack.c.b16 %v400, %v399
    %v502 = vpack.c.b16 %v402, %v401
    %v503 = vpack.c.b16 %v404, %v403
    %v504 = vpack.c.b16 %v406, %v405
    %v505 = vpack.c.b16 %v408, %v407
    %v506 = vpack.c.b16 %v410, %v409
    %v507 = vpack.c.b16 %v412, %v411
    %v508 = vpack.c.b16 %v414, %v413
    %v509 = vpack.c.b16 %v416, %v415
    %v510 = vpack.c.b16 %v418, %v417
    %v511 = vpack.c.b16 %v420, %v419
    %v512 = vpack.c.b16 %v422, %v421
    %v513 = vpack.c.b16 %v424, %v423
    %v514 = vpack.c.b16 %v426, %v425
    %v515 = vpack.c.b16 %v428, %v427
    %v516 = vpack.c.b16 %v430, %v429
    %v517 = vpack.c.b16 %v432, %v431
    %v518 = vpack.c.b16 %v434, %v433
    %v519 = vpack.c.b16 %v436, %v435
    %v520 = vpack.c.b16 %v438, %v437
    %v521 = vpack.c.b16 %v440, %v439
    %v522 = vpack.c.b16 %v442, %v441
    %v523 = vpack.c.b16 %v444, %v443
    %v524 = vpack.c.b16 %v446, %v445
    %v525 = vpack.c.b16 %v448, %v447
    %v526 = vpack.c.b16 %v450, %v449
    %v527 = vpack.c.b16 %v452, %v451
    %v528 = vpack.c.b16 %v454, %v453
    %v529 = vpack.c.b16 %v456, %v455
    %v530 = vpack.c.b16 %v458, %v457
    %v531 = vpack.c.b16 %v460, %v459
    %v532 = vpack.c.b16 %v462, %v461
    %v533 = vpack.c.b16 %v464, %v463
    %v534 = vpack.c.b16 %v466, %v465
    %v535 = vpack.c.b16 %v468, %v467
    %v536 = vpack.c.b16 %v470, %v469
    %v537 = vpack.c.b16 %v472, %v471
    %v538 = vpack.c.b16 %v474, %v473
    %603 = vmatprep.subr.bf16.mxu0 0
    %604 = vmatpush1.bf16.msra.mxu0 %v475
    %605 = vmatprep.subr.bf16.mxu0 0
    %606 = vmatpush1.bf16.msra.mxu0 %v476
    %607 = vmatprep.subr.bf16.mxu0 0
    %608 = vmatpush1.bf16.msra.mxu0 %v477
    %609 = vmatprep.subr.bf16.mxu0 0
    %610 = vmatpush1.bf16.msra.mxu0 %v478
    %611 = vmatprep.subr.bf16.mxu0 0
    %612 = vmatpush1.bf16.msra.mxu0 %v479
    %613 = vmatprep.subr.bf16.mxu0 0
    %614 = vmatpush1.bf16.msra.mxu0 %v480
    %615 = vmatprep.subr.bf16.mxu0 0
    %616 = vmatpush1.bf16.msra.mxu0 %v481
    %617 = vmatprep.subr.bf16.mxu0 0
    %618 = vmatpush1.bf16.msra.mxu0 %v482
    %619 = vmatprep.subr.bf16.mxu0 0
    %620 = vmatpush1.bf16.msra.mxu0 %v483
    %621 = vmatprep.subr.bf16.mxu0 0
    %622 = vmatpush1.bf16.msra.mxu0 %v484
    %623 = vmatprep.subr.bf16.mxu0 0
    %624 = vmatpush1.bf16.msra.mxu0 %v485
    %625 = vmatprep.subr.bf16.mxu0 0
    %626 = vmatpush1.bf16.msra.mxu0 %v486
    %627 = vmatprep.subr.bf16.mxu0 0
    %628 = vmatpush1.bf16.msra.mxu0 %v487
    %629 = vmatprep.subr.bf16.mxu0 0
    %630 = vmatpush1.bf16.msra.mxu0 %v488
    %631 = vmatprep.subr.bf16.mxu0 0
    %632 = vmatpush1.bf16.msra.mxu0 %v489
    %633 = vmatprep.subr.bf16.mxu0 0
    %634 = vmatpush1.bf16.msra.mxu0 %v490
    %635 = vmatprep.mubr.bf16.mxu0 %v204
    %636 = vmatmul.mubr.bf16.gmra.mrb[0].mxu0 %v203
    %v637 = vpop.f32.mrb[0].mxu0
    %v638 = vadd.f32 0.0, %v637
    %v639 = vpop.f32.mrb[0].mxu0
    %v640 = vpop.f32.mrb[0].mxu0
    %v641 = vpop.f32.mrb[0].mxu0
    %642 = vdwg.mxu0
    %643 = vmatprep.subr.bf16.mxu0 0
    %644 = vmatpush1.bf16.msra.mxu0 %v491
    %645 = vmatprep.subr.bf16.mxu0 0
    %646 = vmatpush1.bf16.msra.mxu0 %v492
    %647 = vmatprep.subr.bf16.mxu0 0
    %648 = vmatpush1.bf16.msra.mxu0 %v493
    %649 = vmatprep.subr.bf16.mxu0 0
    %650 = vmatpush1.bf16.msra.mxu0 %v494
    %651 = vmatprep.subr.bf16.mxu0 0
    %652 = vmatpush1.bf16.msra.mxu0 %v495
    %653 = vmatprep.subr.bf16.mxu0 0
    %654 = vmatpush1.bf16.msra.mxu0 %v496
    %655 = vmatprep.subr.bf16.mxu0 0
    %656 = vmatpush1.bf16.msra.mxu0 %v497
    %657 = vmatprep.subr.bf16.mxu0 0
    %658 = vmatpush1.bf16.msra.mxu0 %v498
    %659 = vmatprep.subr.bf16.mxu0 0
    %660 = vmatpush1.bf16.msra.mxu0 %v499
    %661 = vmatprep.subr.bf16.mxu0 0
    %662 = vmatpush1.bf16.msra.mxu0 %v500
    %663 = vmatprep.subr.bf16.mxu0 0
    %664 = vmatpush1.bf16.msra.mxu0 %v501
    %665 = vmatprep.subr.bf16.mxu0 0
    %666 = vmatpush1.bf16.msra.mxu0 %v502
    %667 = vmatprep.subr.bf16.mxu0 0
    %668 = vmatpush1.bf16.msra.mxu0 %v503
    %669 = vmatprep.subr.bf16.mxu0 0
    %670 = vmatpush1.bf16.msra.mxu0 %v504
    %671 = vmatprep.subr.bf16.mxu0 0
    %672 = vmatpush1.bf16.msra.mxu0 %v505
    %673 = vmatprep.subr.bf16.mxu0 0
    %674 = vmatpush1.bf16.msra.mxu0 %v506
    %675 = vmatprep.mubr.bf16.mxu0 %v206
    %676 = vmatmul.mubr.bf16.gmra.mrb[0].mxu0 %v205
    %v677 = vpop.f32.mrb[0].mxu0
    %v678 = vadd.f32 %v638, %v677
    %v679 = vpop.f32.mrb[0].mxu0
    %v680 = vpop.f32.mrb[0].mxu0
    %v681 = vpop.f32.mrb[0].mxu0
    %682 = vdwg.mxu0
    %683 = vmatprep.subr.bf16.mxu0 0
    %684 = vmatpush1.bf16.msra.mxu0 %v507
    %685 = vmatprep.subr.bf16.mxu0 0
    %686 = vmatpush1.bf16.msra.mxu0 %v508
    %687 = vmatprep.subr.bf16.mxu0 0
    %688 = vmatpush1.bf16.msra.mxu0 %v509
    %689 = vmatprep.subr.bf16.mxu0 0
    %690 = vmatpush1.bf16.msra.mxu0 %v510
    %691 = vmatprep.subr.bf16.mxu0 0
    %692 = vmatpush1.bf16.msra.mxu0 %v511
    %693 = vmatprep.subr.bf16.mxu0 0
    %694 = vmatpush1.bf16.msra.mxu0 %v512
    %695 = vmatprep.subr.bf16.mxu0 0
    %696 = vmatpush1.bf16.msra.mxu0 %v513
    %697 = vmatprep.subr.bf16.mxu0 0
    %698 = vmatpush1.bf16.msra.mxu0 %v514
    %699 = vmatprep.subr.bf16.mxu0 0
    %700 = vmatpush1.bf16.msra.mxu0 %v515
    %701 = vmatprep.subr.bf16.mxu0 0
    %702 = vmatpush1.bf16.msra.mxu0 %v516
    %703 = vmatprep.subr.bf16.mxu0 0
    %704 = vmatpush1.bf16.msra.mxu0 %v517
    %705 = vmatprep.subr.bf16.mxu0 0
    %706 = vmatpush1.bf16.msra.mxu0 %v518
    %707 = vmatprep.subr.bf16.mxu0 0
    %708 = vmatpush1.bf16.msra.mxu0 %v519
    %709 = vmatprep.subr.bf16.mxu0 0
    %710 = vmatpush1.bf16.msra.mxu0 %v520
    %711 = vmatprep.subr.bf16.mxu0 0
    %712 = vmatpush1.bf16.msra.mxu0 %v521
    %713 = vmatprep.subr.bf16.mxu0 0
    %714 = vmatpush1.bf16.msra.mxu0 %v522
    %715 = vmatprep.mubr.bf16.mxu0 %v208
    %716 = vmatmul.mubr.bf16.gmra.mrb[0].mxu0 %v207
    %v717 = vpop.f32.mrb[0].mxu0
    %v718 = vadd.f32 %v678, %v717
    %v719 = vpop.f32.mrb[0].mxu0
    %v720 = vpop.f32.mrb[0].mxu0
    %v721 = vpop.f32.mrb[0].mxu0
    %722 = vdwg.mxu0
    %723 = vmatprep.subr.bf16.mxu0 0
    %724 = vmatpush1.bf16.msra.mxu0 %v523
    %725 = vmatprep.subr.bf16.mxu0 0
    %726 = vmatpush1.bf16.msra.mxu0 %v524
    %727 = vmatprep.subr.bf16.mxu0 0
    %728 = vmatpush1.bf16.msra.mxu0 %v525
    %729 = vmatprep.subr.bf16.mxu0 0
    %730 = vmatpush1.bf16.msra.mxu0 %v526
    %731 = vmatprep.subr.bf16.mxu0 0
    %732 = vmatpush1.bf16.msra.mxu0 %v527
    %733 = vmatprep.subr.bf16.mxu0 0
    %734 = vmatpush1.bf16.msra.mxu0 %v528
    %735 = vmatprep.subr.bf16.mxu0 0
    %736 = vmatpush1.bf16.msra.mxu0 %v529
    %737 = vmatprep.subr.bf16.mxu0 0
    %738 = vmatpush1.bf16.msra.mxu0 %v530
    %739 = vmatprep.subr.bf16.mxu0 0
    %740 = vmatpush1.bf16.msra.mxu0 %v531
    %741 = vmatprep.subr.bf16.mxu0 0
    %742 = vmatpush1.bf16.msra.mxu0 %v532
    %743 = vmatprep.subr.bf16.mxu0 0
    %744 = vmatpush1.bf16.msra.mxu0 %v533
    %745 = vmatprep.subr.bf16.mxu0 0
    %746 = vmatpush1.bf16.msra.mxu0 %v534
    %747 = vmatprep.subr.bf16.mxu0 0
    %748 = vmatpush1.bf16.msra.mxu0 %v535
    %749 = vmatprep.subr.bf16.mxu0 0
    %750 = vmatpush1.bf16.msra.mxu0 %v536
    %751 = vmatprep.subr.bf16.mxu0 0
    %752 = vmatpush1.bf16.msra.mxu0 %v537
    %753 = vmatprep.subr.bf16.mxu0 0
    %754 = vmatpush1.bf16.msra.mxu0 %v538
    %755 = vmatprep.mubr.bf16.mxu0 %v210
    %756 = vmatmul.mubr.bf16.gmra.mrb[0].mxu0 %v209
    %v757 = vpop.f32.mrb[0].mxu0
    %v758 = vadd.f32 %v718, %v757
    %v759 = vpop.f32.mrb[0].mxu0
    %v760 = vpop.f32.mrb[0].mxu0
    %v761 = vpop.f32.mrb[0].mxu0
    %762 = vdwg.mxu0
    %v763 = vadd.f32 %v186, %v758
    %764 = vst [vmem:[#allocation2] sm:$0xff] %v763
    // Predicated region
    $region34: #{tpu_custom_call.1} parent=1 // pred_check
      %p765 = pneg %p48
    $region35: #{tpu_custom_call.1} parent=1 // pred_check_branch
      %767 = sbr.rel (%p765) target = $region37
    $region36: #{tpu_custom_call.1} parent=1 // pred_region
      %v768 = vlaneseq
      %v769 = vand.u32 %v768, 127
      %vm770 = vcmp.lt.s32.totalorder %v769, 60
      %v771 = vlaneseq
      %v772 = vshrl.u32 %v771, 7
      %s773 = smul.u32 0, 8
      %v774 = vstv %s773
      %v775 = vadd.s32 %v772, %v774
      %vm776 = vcmp.lt.s32.totalorder %v775, 2
      %v777 = vsel %vm776, 1, 0
      %v778 = vcvt.s32.f32 %v777
      %v779 = vld [vmem:[#allocation2] sm:$0xff]
      %v780 = vld [vmem:[%s2] sm:$0x1]
      %v782 = vlaneseq
      %v783 = vshrl.u32 %v782, 7
      %v784 = vsub.s32 0, %v783
      %v785 = vrot.slane %v780, %v784
      %v787 = vadd.f32 %v779, %v785
      %v788 = vld [vmem:[%s3] sm:$0xff]
      %v789 = vld [vmem:[%s4] sm:$0xff]
      %790 = vset.pattern.permute.xlu0 0
      %791 = vperm.xlu0 %790, %v789
      %v792 = vpop.permute.xlu0 %791
      %vm793 = vcmp.eq.s32.totalorder %v769, %v792
      %v794 = vsel %vm793, 1, 0
      %v795 = vcvt.s32.f32 %v794
      %v796 = vsel %vm770, %v788, -1e+30
      %797 = vmax.xlane.f32.xlu0 %v796
      %v798 = vpop.xlane.xlu0 %797
      %v799 = vsub.f32 %v796, %v798
      %v800 = vmul.f32 %v799, 1.442695
      %v801 = vpow.pop %v800
      %802 = vadd.xlane.f32.xlu0 %v801
      %v803 = vpop.xlane.xlu0 %802
      %v804 = vlog2.pop %v803
      %v805 = vmul.f32 %v804, 0.6931472
      %v806 = vadd.f32 %v798, %v805
      %v807 = vmul.f32 %v795, %v788
      %808 = vadd.xlane.f32.xlu0 %v807
      %v809 = vpop.xlane.xlu0 %808
      %v810 = vsub.f32 %v806, %v809
      %v811 = vmul.f32 %v778, %v810
      %vm812 = vcmask 7168
      %v813 = vsel %vm812, %v811, 0.0
      %814 = vadd.xlane.f32.xlu0 %v813
      %v815 = vpop.xlane.xlu0 %814
      %v816 = vrot.slane %v815, 4
      %v817 = vadd.f32 %v815, %v816
      %v818 = vrot.slane %v817, 2
      %v819 = vadd.f32 %v817, %v818
      %v820 = vrot.slane %v819, 1
      %v821 = vadd.f32 %v819, %v820
      %s822 = vtos %v821
      %v823 = vmul.f32 %v795, 0.5
      %v824 = vsub.f32 %v823, 4.1050987
      %v825 = vmul.f32 %v787, 0.5
      %v826 = vsel %vm770, %v825, -1e+30
      %827 = vmax.xlane.f32.xlu0 %v826
      %v828 = vpop.xlane.xlu0 %827
      %v829 = vsub.f32 %v826, %v828
      %v830 = vmul.f32 %v829, 1.442695
      %v831 = vpow.pop %v830
      %832 = vadd.xlane.f32.xlu0 %v831
      %v833 = vpop.xlane.xlu0 %832
      %v834 = vlog2.pop %v833
      %v835 = vmul.f32 %v834, 0.6931472
      %v836 = vadd.f32 %v828, %v835
      %v837 = vsub.f32 %v826, %v836
      %v838 = vmul.f32 %v837, 1.442695
      %v839 = vpow.pop %v838
      %v840 = vsub.f32 %v837, %v824
      %v841 = vmul.f32 %v839, %v840
      %v842 = vsel %vm770, %v841, 0.0
      %843 = vadd.xlane.f32.xlu0 %v842
      %v844 = vpop.xlane.xlu0 %843
      %v845 = vmul.f32 %v778, %v844
      %v846 = vsel %vm812, %v845, 0.0
      %847 = vadd.xlane.f32.xlu0 %v846
      %v848 = vpop.xlane.xlu0 %847
      %v849 = vrot.slane %v848, 4
      %v850 = vadd.f32 %v848, %v849
      %v851 = vrot.slane %v850, 2
      %v852 = vadd.f32 %v850, %v851
      %v853 = vrot.slane %v852, 1
      %v854 = vadd.f32 %v852, %v853
      %s855 = vtos %v854
      %vm856 = vcmp.eq.s32.totalorder %v769, 0
      %vm857 = vcmp.eq.s32.totalorder %v769, 1
      %v858 = vstv %s855
      %v859 = vsel %vm857, %v858, 0.0
      %v860 = vstv %s822
      %v861 = vsel %vm856, %v860, %v859
      %862 = vst [vmem:[#allocation8] sm:$0x1] %v861
    $region37: #{tpu_custom_call.1} parent=1 // pred_fallthru
      _
    // Predicated region
    $region38: #{tpu_custom_call.1} parent=1 // pred_check
      _
    $region39: #{tpu_custom_call.1} parent=1 // pred_check_branch
      %864 = sbr.rel (0) target = $region41
    $region40: #{tpu_custom_call.1} parent=1 // pred_region
      %s866 = ssub.s32 16, 16
      %867 = vsyncadd [#allocation5], %s866
      %s869 = sshll.u32 [#allocation8], 4
      %s870 = int_to_ptr.vmem [resolvable:$true] %s869
      %872 = dma.vmem_to_hbm [thread:$0]  %s870, 16, %s5, [#allocation5]
    $region41: #{tpu_custom_call.1} parent=1 // pred_fallthru
      _
    // Predicated region
    $region42: #{tpu_custom_call.1} parent=1 // pred_check
      _
    $region43: #{tpu_custom_call.1} parent=1 // pred_check_branch
      %874 = sbr.rel (0) target = $region45
    $region44: #{tpu_custom_call.1} parent=1 // pred_region
      %875 = dma.done [#allocation5], 16
    $region45: #{tpu_custom_call.1} parent=1 // pred_fallthru
      _
    %876 = vsyncpa [#allocation4], 1
    %877 = vsyncpa [#allocation7], 1
    %878 = vsyncpa [#allocation5], 1

</llo_original>
